<compile_context>
chip_gen: v6e
topology: v6e:2x2x1
jax: 0.10.0
libtpu: 0.0.40
codegen_flags: <defaults>
</compile_context>

<pallas_src>
import functools

import jax
import jax.numpy as jnp
from jax.experimental import pallas as pl
from jax.experimental.pallas import tpu as pltpu

EPS = 1e-5                          # PyTorch GroupNorm default eps
VMEM_LIMIT = 48 * 1024 * 1024       # scoped-VMEM headroom valid on v5e/v6e (128 MiB) and v7x (64 MiB)


def _pick_row_tile(h):
    """Rows per conv tile: bounded VMEM per step and enough grid steps to shard over TCs."""
    for t in (16, 8, 4):
        if h % t == 0 and h > t:
            return t
    return h


def _pick_seq_tile(n):
    """q/kv tile for flash attention: multiple of 8 sublanes, 128 when possible."""
    if n % 128 == 0:
        return 128
    for t in (32, 64, 16, 8):
        if n % t == 0 and n > t:
            return t
    return n


# --------------------- GroupNorm statistics (stats-only Pallas pass) ---------------------
def _gn_stats_kernel(x_ref, gmap_ref, gmapt_ref, mean_ref, inv_ref, *, inv_n):
    x = x_ref[0]                                                     # (HW, C) f32
    # Two-pass, f32 group statistics (avoids E[x^2] - E[x]^2 cancellation).
    sum_c = jnp.sum(x, axis=0, keepdims=True)                        # (1, C)
    mean_g = jnp.dot(sum_c, gmap_ref[...],
                     preferred_element_type=jnp.float32) * inv_n     # (1, G)
    mean_c = jnp.dot(mean_g, gmapt_ref[...],
                     preferred_element_type=jnp.float32)             # (1, C)
    d = x - mean_c
    ss_c = jnp.sum(d * d, axis=0, keepdims=True)                     # (1, C)
    var_g = jnp.dot(ss_c, gmap_ref[...],
                    preferred_element_type=jnp.float32) * inv_n      # (1, G)
    var_c = jnp.dot(var_g, gmapt_ref[...],
                    preferred_element_type=jnp.float32)              # (1, C)
    mean_ref[0] = mean_c
    inv_ref[0] = jax.lax.rsqrt(var_c + EPS)


def gn_stats(x_seq, n_groups):
    """x_seq: (B, HW, C) f32 -> per-(batch, channel) mean, rsqrt(var+eps): each (B, 1, C)."""
    B, HW, C = x_seq.shape
    G = n_groups
    gs = C // G
    gmap = jnp.repeat(jnp.eye(G, dtype=jnp.float32), gs, axis=0)     # (C, G) one-hot membership
    kern = functools.partial(_gn_stats_kernel, inv_n=1.0 / float(HW * gs))
    return pl.pallas_call(
        kern,
        out_shape=(jax.ShapeDtypeStruct((B, 1, C), jnp.float32),
                   jax.ShapeDtypeStruct((B, 1, C), jnp.float32)),
        grid=(B,),
        in_specs=[
            pl.BlockSpec((1, HW, C), lambda b: (b, 0, 0)),
            pl.BlockSpec((C, G), lambda b: (0, 0)),
            pl.BlockSpec((G, C), lambda b: (0, 0)),
        ],
        out_specs=[pl.BlockSpec((1, 1, C), lambda b: (b, 0, 0)),
                   pl.BlockSpec((1, 1, C), lambda b: (b, 0, 0))],
        compiler_params=pltpu.CompilerParams(dimension_semantics=("parallel",)),
    )(x_seq, gmap, gmap.T)


def _norm_affine(x_seq, gamma, beta, n_groups):
    """Fold GroupNorm into a per-(batch, channel) affine: y = x * scale + shift."""
    mean, inv = gn_stats(x_seq, n_groups)
    C = x_seq.shape[-1]
    scale = inv * gamma.reshape(1, 1, C)
    shift = beta.reshape(1, 1, C) - mean * scale
    return scale, shift


# ------------ fused GroupNorm-affine (+SiLU) + 3x3 conv (+residual add) kernel ------------
def _make_gn_conv3x3_kernel(H, W, th, Cin, Cout, apply_silu, has_res):
    def kernel(x_hbm, scale_ref, shift_ref, w_ref, b_ref, *rest):
        if has_res:
            res_ref, o_ref, xbuf, sem = rest
        else:
            o_ref, xbuf, sem = rest
        b = pl.program_id(0)
        r = pl.program_id(1)
        row0 = r * th                                        # first padded row of this tile

        # Manual DMA of the (th+2)-row halo window of the zero-padded NHWC activation.
        cp = pltpu.make_async_copy(x_hbm.at[b, pl.ds(row0, th + 2)], xbuf, sem)
        cp.start()
        cp.wait()
        x = xbuf[...]                                        # (th+2, W+2, Cin) f32

        # Fused GroupNorm affine (+ SiLU), f32 element math.
        xn = x * scale_ref[0] + shift_ref[0]
        if apply_silu:
            xn = xn * jax.nn.sigmoid(xn)
        # The conv's zero padding must stay exactly zero after the fused norm -> mask border.
        gr = jax.lax.broadcasted_iota(jnp.int32, xn.shape, 0) + row0    # global padded row
        gc = jax.lax.broadcasted_iota(jnp.int32, xn.shape, 1)           # padded col
        valid = (gr >= 1) & (gr <= H) & (gc >= 1) & (gc <= W)
        xn = jnp.where(valid, xn, 0.0)

        # 3x3 conv: 9 shifted-tap bf16 matmuls, f32 accumulation on the MXU.
        # (the 9x read amplification happens only in VMEM views, never in HBM)
        acc = jnp.zeros((th * W, Cout), jnp.float32)
        for t in range(9):
            dh, dw = t // 3, t % 3
            a = xn[dh:dh + th, dw:dw + W, :].reshape(th * W, Cin).astype(jnp.bfloat16)
            acc = acc + jnp.dot(a, w_ref[t], preferred_element_type=jnp.float32)

        out = acc.reshape(th, W, Cout) + b_ref[...]
        if has_res:
            out = out + res_ref[0]
        o_ref[0] = out

    return kernel


def gn_conv3x3(x_pad, scale, shift, w9, bias, *, apply_silu, residual=None):
    """Fused GroupNorm-affine (+SiLU) + 3x3 / stride-1 conv (+ residual add).

    x_pad : (B, H+2, W+2, Cin) f32 zero-padded pre-norm activation (stays in HBM/ANY).
    scale, shift : (B, 1, Cin) f32 per-(batch, channel) affine folded from the GroupNorm.
    w9    : (9, Cin, Cout) bf16 conv taps (tap t = 3*dh + dw);  bias : (1, Cout) f32.
    """
    B, Hp, Wp, Cin = x_pad.shape
    H, W = Hp - 2, Wp - 2
    Cout = w9.shape[-1]
    th = _pick_row_tile(H)
    kern = _make_gn_conv3x3_kernel(H, W, th, Cin, Cout, apply_silu, residual is not None)

    in_specs = [
        pl.BlockSpec(memory_space=pl.ANY),                            # padded activation (HBM)
        pl.BlockSpec((1, 1, Cin), lambda b, r: (b, 0, 0)),            # norm scale
        pl.BlockSpec((1, 1, Cin), lambda b, r: (b, 0, 0)),            # norm shift
        pl.BlockSpec((9, Cin, Cout), lambda b, r: (0, 0, 0)),         # conv taps (bf16)
        pl.BlockSpec((1, Cout), lambda b, r: (0, 0)),                 # conv bias
    ]
    args = [x_pad, scale, shift, w9, bias]
    if residual is not None:
        in_specs.append(pl.BlockSpec((1, th, W, Cout), lambda b, r: (b, r, 0, 0)))
        args.append(residual)

    return pl.pallas_call(
        kern,
        out_shape=jax.ShapeDtypeStruct((B, H, W, Cout), jnp.float32),
        grid=(B, H // th),
        in_specs=in_specs,
        out_specs=pl.BlockSpec((1, th, W, Cout), lambda b, r: (b, r, 0, 0)),
        scratch_shapes=[pltpu.VMEM((th + 2, Wp, Cin), jnp.float32),
                        pltpu.SemaphoreType.DMA],
        compiler_params=pltpu.CompilerParams(
            dimension_semantics=("parallel", "parallel"),
            vmem_limit_bytes=VMEM_LIMIT),
    )(*args)


# -------- fused GroupNorm + flash attention (qkv, online softmax, dense, residual) --------
def _make_attention_kernel(scale):
    def kernel(xq_ref, xkv_ref, nscale_ref, nshift_ref, w_ref, bqkv_ref,
               wd_ref, bd_ref, o_ref, q_sc, m_sc, l_sc, acc_sc):
        ki = pl.program_id(2)

        @pl.when(ki == 0)
        def _():
            xq = xq_ref[0] * nscale_ref[0] + nshift_ref[0]            # fused GroupNorm
            q = jnp.dot(xq.astype(jnp.bfloat16), w_ref[0],
                        preferred_element_type=jnp.float32) + bqkv_ref[0]
            q_sc[...] = q * scale
            m_sc[...] = jnp.full(m_sc.shape, -jnp.inf, jnp.float32)
            l_sc[...] = jnp.zeros(l_sc.shape, jnp.float32)
            acc_sc[...] = jnp.zeros(acc_sc.shape, jnp.float32)

        xkv = (xkv_ref[0] * nscale_ref[0] + nshift_ref[0]).astype(jnp.bfloat16)
        k = jnp.dot(xkv, w_ref[1], preferred_element_type=jnp.float32) + bqkv_ref[1]
        v = jnp.dot(xkv, w_ref[2], preferred_element_type=jnp.float32) + bqkv_ref[2]

        s = jax.lax.dot_general(q_sc[...].astype(jnp.bfloat16), k.astype(jnp.bfloat16),
                                (((1,), (1,)), ((), ())),
                                preferred_element_type=jnp.float32)   # (tq, tkv)
        m_new = jnp.maximum(m_sc[...], jnp.max(s, axis=-1, keepdims=True))
        alpha = jnp.exp(m_sc[...] - m_new)
        p = jnp.exp(s - m_new)
        l_sc[...] = alpha * l_sc[...] + jnp.sum(p, axis=-1, keepdims=True)
        acc_sc[...] = alpha * acc_sc[...] + jnp.dot(
            p.astype(jnp.bfloat16), v.astype(jnp.bfloat16),
            preferred_element_type=jnp.float32)
        m_sc[...] = m_new

        @pl.when(ki == pl.num_programs(2) - 1)
        def _():
            attn = acc_sc[...] * pl.reciprocal(l_sc[...], approx=True)
            out = jnp.dot(attn.astype(jnp.bfloat16), wd_ref[...],
                          preferred_element_type=jnp.float32) + bd_ref[...]
            o_ref[0] = out + xq_ref[0]                                # residual add (raw x)

    return kernel


def attention(x_seq, nscale, nshift, w_stack, b_stack, wd_t, bd, d_k):
    """Flash-style single-head self-attention with fused GroupNorm, qkv / dense
    projections and residual add.  x_seq: (B, HW, C) f32 raw (pre-norm) activation."""
    B, HW, C = x_seq.shape
    tq = _pick_seq_tile(HW)
    tkv = tq
    kern = _make_attention_kernel(float(d_k) ** -0.5)
    return pl.pallas_call(
        kern,
        out_shape=jax.ShapeDtypeStruct((B, HW, C), jnp.float32),
        grid=(B, HW // tq, HW // tkv),
        in_specs=[
            pl.BlockSpec((1, tq, C), lambda b, qi, ki: (b, qi, 0)),   # q-tile rows (raw)
            pl.BlockSpec((1, tkv, C), lambda b, qi, ki: (b, ki, 0)),  # kv-tile rows (raw)
            pl.BlockSpec((1, 1, C), lambda b, qi, ki: (b, 0, 0)),     # norm scale
            pl.BlockSpec((1, 1, C), lambda b, qi, ki: (b, 0, 0)),     # norm shift
            pl.BlockSpec((3, C, d_k), lambda b, qi, ki: (0, 0, 0)),   # wq / wk / wv (bf16)
            pl.BlockSpec((3, 1, d_k), lambda b, qi, ki: (0, 0, 0)),   # bq / bk / bv
            pl.BlockSpec((d_k, C), lambda b, qi, ki: (0, 0)),         # dense weight (bf16)
            pl.BlockSpec((1, C), lambda b, qi, ki: (0, 0)),           # dense bias
        ],
        out_specs=pl.BlockSpec((1, tq, C), lambda b, qi, ki: (b, qi, 0)),
        scratch_shapes=[pltpu.VMEM((tq, d_k), jnp.float32),           # scaled q
                        pltpu.VMEM((tq, 1), jnp.float32),             # running max
                        pltpu.VMEM((tq, 1), jnp.float32),             # running denominator
                        pltpu.VMEM((tq, d_k), jnp.float32)],          # output accumulator
        compiler_params=pltpu.CompilerParams(
            dimension_semantics=("parallel", "parallel", "arbitrary"),
            vmem_limit_bytes=VMEM_LIMIT),
    )(x_seq, x_seq, nscale, nshift, w_stack, b_stack, wd_t, bd)


# ----------------------------------- VAEDownBlock forward -----------------------------------
def vae_down_block(x_nchw, params, has_attn=True):
    B, Cin, H, W = x_nchw.shape
    Cout = params["conv1_w"].shape[0]
    HW = H * W
    x = jnp.transpose(x_nchw, (0, 2, 3, 1))                           # NHWC once at entry

    def conv_w9(w_oihw):
        # (Cout, Cin, 3, 3) -> (9, Cin, Cout) bf16, tap index t = 3*dh + dw
        co, ci = w_oihw.shape[0], w_oihw.shape[1]
        return jnp.transpose(w_oihw, (2, 3, 1, 0)).reshape(9, ci, co).astype(jnp.bfloat16)

    # --- VAEResidualBlock: norm1 + SiLU fused into conv1 ---
    s1, t1 = _norm_affine(x.reshape(B, HW, Cin), params["norm1_g"], params["norm1_b"], 16)
    x_pad = jnp.pad(x, ((0, 0), (1, 1), (1, 1), (0, 0)))
    h = gn_conv3x3(x_pad, s1, t1, conv_w9(params["conv1_w"]),
                   params["conv1_b"].reshape(1, Cout), apply_silu=True)

    # Shortcut: 3x3 conv on the raw input when in_ch != out_ch (identity affine, no SiLU).
    if Cin == Cout:
        shortcut = x
    else:
        ident_s = jnp.ones((B, 1, Cin), jnp.float32)
        ident_t = jnp.zeros((B, 1, Cin), jnp.float32)
        shortcut = gn_conv3x3(x_pad, ident_s, ident_t, conv_w9(params["short_w"]),
                              params["short_b"].reshape(1, Cout), apply_silu=False)

    # norm2 + SiLU fused into conv2; the shortcut is added inside the same kernel.
    s2, t2 = _norm_affine(h.reshape(B, HW, Cout), params["norm2_g"], params["norm2_b"], 16)
    h_pad = jnp.pad(h, ((0, 0), (1, 1), (1, 1), (0, 0)))
    res = gn_conv3x3(h_pad, s2, t2, conv_w9(params["conv2_w"]),
                     params["conv2_b"].reshape(1, Cout), apply_silu=True,
                     residual=shortcut)

    # --- VAEAttentionBlock (n_heads=1, d_k=Cout, n_groups=32), GroupNorm fused ---
    if has_attn:
        res_seq = res.reshape(B, HW, Cout)
        s3, t3 = _norm_affine(res_seq, params["attn_norm_g"], params["attn_norm_b"], 32)
        d_k = Cout
        w_stack = params["wqkv_t"].reshape(Cout, 3, d_k).transpose(1, 0, 2).astype(jnp.bfloat16)
        b_stack = params["bqkv"].reshape(3, 1, d_k)
        out_seq = attention(res_seq, s3, t3, w_stack, b_stack,
                            params["wd_t"].astype(jnp.bfloat16),
                            params["bd"].reshape(1, Cout), d_k)
        res = out_seq.reshape(B, H, W, Cout)

    return jnp.transpose(res, (0, 3, 1, 2))                           # back to NCHW at exit


# -------------------------------------- pure-JAX reference --------------------------------------
def _ref_groupnorm(x, g, b, G):
    B, C, H, W = x.shape
    xg = x.reshape(B, G, (C // G) * H * W)
    m = xg.mean(-1, keepdims=True)
    v = xg.var(-1, keepdims=True)
    xg = (xg - m) / jnp.sqrt(v + EPS)
    x = xg.reshape(B, C, H, W)
    return x * g.reshape(1, C, 1, 1) + b.reshape(1, C, 1, 1)


def _ref_conv(x, w, b):
    out = jax.lax.conv_general_dilated(x, w, (1, 1), "SAME",
                                       dimension_numbers=("NCHW", "OIHW", "NCHW"),
                                       precision=jax.lax.Precision.HIGHEST)
    return out + b.reshape(1, -1, 1, 1)


def ref_forward(x, params):
    hp = jax.lax.Precision.HIGHEST
    silu = lambda t: t * jax.nn.sigmoid(t)
    h = _ref_conv(silu(_ref_groupnorm(x, params["norm1_g"], params["norm1_b"], 16)),
                  params["conv1_w"], params["conv1_b"])
    h = _ref_conv(silu(_ref_groupnorm(h, params["norm2_g"], params["norm2_b"], 16)),
                  params["conv2_w"], params["conv2_b"])
    res = h + _ref_conv(x, params["short_w"], params["short_b"])
    B, C, H, W = res.shape
    xs = res.reshape(B, C, H * W).transpose(0, 2, 1)
    xn = _ref_groupnorm(res, params["attn_norm_g"], params["attn_norm_b"], 32)
    xn = xn.reshape(B, C, H * W).transpose(0, 2, 1)
    qkv = jnp.einsum("bnc,cd->bnd", xn, params["wqkv_t"], precision=hp) + params["bqkv"]
    q, k, v = qkv[..., :C], qkv[..., C:2 * C], qkv[..., 2 * C:]
    s = jnp.einsum("bqc,bkc->bqk", q, k, precision=hp) * (C ** -0.5)
    p = jax.nn.softmax(s, axis=-1)
    o = jnp.einsum("bqk,bkc->bqc", p, v, precision=hp)
    o = jnp.einsum("bnk,kc->bnc", o, params["wd_t"], precision=hp) + params["bd"] + xs
    return o.transpose(0, 2, 1).reshape(B, C, H, W)


# -------------------------------------------- main --------------------------------------------
if __name__ == "__main__":
    B, in_ch, out_ch, H, W = 2, 16, 32, 8, 8

    key = jax.random.PRNGKey(0)
    ks = jax.random.split(key, 17)
    nrm = lambda k, shape, std: std * jax.random.normal(k, shape, dtype=jnp.float32)

    params = {
        "norm1_g": 1.0 + nrm(ks[0], (in_ch,), 0.1),
        "norm1_b": nrm(ks[1], (in_ch,), 0.1),
        "conv1_w": nrm(ks[2], (out_ch, in_ch, 3, 3), (in_ch * 9) ** -0.5),
        "conv1_b": nrm(ks[3], (out_ch,), 0.05),
        "norm2_g": 1.0 + nrm(ks[4], (out_ch,), 0.1),
        "norm2_b": nrm(ks[5], (out_ch,), 0.1),
        "conv2_w": nrm(ks[6], (out_ch, out_ch, 3, 3), (out_ch * 9) ** -0.5),
        "conv2_b": nrm(ks[7], (out_ch,), 0.05),
        "short_w": nrm(ks[8], (out_ch, in_ch, 3, 3), (in_ch * 9) ** -0.5),
        "short_b": nrm(ks[9], (out_ch,), 0.05),
        "attn_norm_g": 1.0 + nrm(ks[10], (out_ch,), 0.1),
        "attn_norm_b": nrm(ks[11], (out_ch,), 0.1),
        # Linear weights stored pre-transposed: (in_features, out_features)
        "wqkv_t": nrm(ks[12], (out_ch, 3 * out_ch), out_ch ** -0.5),
        "bqkv": nrm(ks[13], (3 * out_ch,), 0.05),
        "wd_t": nrm(ks[14], (out_ch, out_ch), out_ch ** -0.5),
        "bd": nrm(ks[15], (out_ch,), 0.05),
    }

    x = jax.random.normal(ks[16], (B, in_ch, H, W), dtype=jnp.float32)

    out = jax.block_until_ready(vae_down_block(x, params, has_attn=True))
    ref = jax.block_until_ready(ref_forward(x, params))

    assert out.shape == (B, out_ch, H, W), out.shape
    max_err = float(jnp.max(jnp.abs(out - ref)))
    # bf16 MXU operands with f32 accumulation vs. f32-"highest" reference
    assert jnp.allclose(out, ref, rtol=2e-2, atol=3e-2), max_err
    print("KERNEL_OK")
</pallas_src>

<mosaic_0001>
module attributes {stable_mosaic.version = 11 : i64} {
  func.func @_gn_stats_kernel(%arg0: i32, %arg1: memref<1x64x16xf32, #tpu.memory_space<vmem>>, %arg2: memref<16x16xf32, #tpu.memory_space<vmem>>, %arg3: memref<16x16xf32, #tpu.memory_space<vmem>>, %arg4: memref<1x1x16xf32, #tpu.memory_space<vmem>>, %arg5: memref<1x1x16xf32, #tpu.memory_space<vmem>>) attributes {dimension_semantics = [#tpu.dimension_semantics<parallel>], iteration_bounds = array<i64: 2>, scalar_prefetch = 0 : i64, scratch_operands = 0 : i64, tpu.core_type = #tpu.core_type<tc>, window_params = [{transform_indices = @transform_0, window_bounds = array<i64: 1, 64, 16>}, {pipeline_mode = #tpu.pipeline_mode<synchronous>, transform_indices = @transform_1, window_bounds = array<i64: 16, 16>}, {pipeline_mode = #tpu.pipeline_mode<synchronous>, transform_indices = @transform_2, window_bounds = array<i64: 16, 16>}, {transform_indices = @transform_3, window_bounds = array<i64: 1, 1, 16>}, {transform_indices = @transform_4, window_bounds = array<i64: 1, 1, 16>}]} {
    %c0 = arith.constant 0 : index
    %c0_0 = arith.constant 0 : index
    %c0_1 = arith.constant 0 : index
    %0 = vector.load %arg1[%c0, %c0_0, %c0_1] : memref<1x64x16xf32, #tpu.memory_space<vmem>>, vector<1x64x16xf32>
    %1 = vector.shape_cast %0 : vector<1x64x16xf32> to vector<64x16xf32>
    %cst = arith.constant dense<0.000000e+00> : vector<16xf32>
    %2 = vector.multi_reduction <add>, %1, %cst [0] : vector<64x16xf32> to vector<16xf32>
    %3 = vector.shape_cast %2 : vector<16xf32> to vector<1x16xf32>
    %c0_2 = arith.constant 0 : index
    %c0_3 = arith.constant 0 : index
    %4 = vector.load %arg2[%c0_2, %c0_3] : memref<16x16xf32, #tpu.memory_space<vmem>>, vector<16x16xf32>
    %cst_4 = arith.constant dense<0.000000e+00> : vector<1x16xf32>
    %5 = tpu.matmul %3, %4, %cst_4 {dimension_numbers = #tpu.dot_dimension_numbers<[1], [0], [0], [1], [0, 0, 1, 1], [], []>} : vector<1x16xf32>, vector<16x16xf32>, vector<1x16xf32> -> vector<1x16xf32>
    %cst_5 = arith.constant 1.562500e-02 : f32
    %6 = vector.broadcast %cst_5 : f32 to vector<1x16xf32>
    %7 = arith.mulf %5, %6 : vector<1x16xf32>
    %c0_6 = arith.constant 0 : index
    %c0_7 = arith.constant 0 : index
    %8 = vector.load %arg3[%c0_6, %c0_7] : memref<16x16xf32, #tpu.memory_space<vmem>>, vector<16x16xf32>
    %cst_8 = arith.constant dense<0.000000e+00> : vector<1x16xf32>
    %9 = tpu.matmul %7, %8, %cst_8 {dimension_numbers = #tpu.dot_dimension_numbers<[1], [0], [0], [1], [0, 0, 1, 1], [], []>} : vector<1x16xf32>, vector<16x16xf32>, vector<1x16xf32> -> vector<1x16xf32>
    %10 = vector.broadcast %9 : vector<1x16xf32> to vector<64x16xf32>
    %11 = arith.subf %1, %10 : vector<64x16xf32>
    %12 = arith.mulf %11, %11 : vector<64x16xf32>
    %cst_9 = arith.constant dense<0.000000e+00> : vector<16xf32>
    %13 = vector.multi_reduction <add>, %12, %cst_9 [0] : vector<64x16xf32> to vector<16xf32>
    %14 = vector.shape_cast %13 : vector<16xf32> to vector<1x16xf32>
    %c0_10 = arith.constant 0 : index
    %c0_11 = arith.constant 0 : index
    %15 = vector.load %arg2[%c0_10, %c0_11] : memref<16x16xf32, #tpu.memory_space<vmem>>, vector<16x16xf32>
    %cst_12 = arith.constant dense<0.000000e+00> : vector<1x16xf32>
    %16 = tpu.matmul %14, %15, %cst_12 {dimension_numbers = #tpu.dot_dimension_numbers<[1], [0], [0], [1], [0, 0, 1, 1], [], []>} : vector<1x16xf32>, vector<16x16xf32>, vector<1x16xf32> -> vector<1x16xf32>
    %cst_13 = arith.constant 1.562500e-02 : f32
    %17 = vector.broadcast %cst_13 : f32 to vector<1x16xf32>
    %18 = arith.mulf %16, %17 : vector<1x16xf32>
    %c0_14 = arith.constant 0 : index
    %c0_15 = arith.constant 0 : index
    %19 = vector.load %arg3[%c0_14, %c0_15] : memref<16x16xf32, #tpu.memory_space<vmem>>, vector<16x16xf32>
    %cst_16 = arith.constant dense<0.000000e+00> : vector<1x16xf32>
    %20 = tpu.matmul %18, %19, %cst_16 {dimension_numbers = #tpu.dot_dimension_numbers<[1], [0], [0], [1], [0, 0, 1, 1], [], []>} : vector<1x16xf32>, vector<16x16xf32>, vector<1x16xf32> -> vector<1x16xf32>
    %c0_17 = arith.constant 0 : index
    %c0_18 = arith.constant 0 : index
    %c0_19 = arith.constant 0 : index
    %21 = vector.load %arg4[%c0_17, %c0_18, %c0_19] : memref<1x1x16xf32, #tpu.memory_space<vmem>>, vector<1x1x16xf32>
    %22 = vector.shape_cast %21 : vector<1x1x16xf32> to vector<1x16xf32>
    %23 = vector.shape_cast %9 : vector<1x16xf32> to vector<1x1x16xf32>
    tpu.vector_store %arg4[%c0_17, %c0_18, %c0_19], %23 {strides = array<i32>} : memref<1x1x16xf32, #tpu.memory_space<vmem>>, vector<1x1x16xf32>,
    %cst_20 = arith.constant 9.99999974E-6 : f32
    %24 = vector.broadcast %cst_20 : f32 to vector<1x16xf32>
    %25 = arith.addf %20, %24 : vector<1x16xf32>
    %26 = math.rsqrt %25 : vector<1x16xf32>
    %c0_21 = arith.constant 0 : index
    %c0_22 = arith.constant 0 : index
    %c0_23 = arith.constant 0 : index
    %27 = vector.load %arg5[%c0_21, %c0_22, %c0_23] : memref<1x1x16xf32, #tpu.memory_space<vmem>>, vector<1x1x16xf32>
    %28 = vector.shape_cast %27 : vector<1x1x16xf32> to vector<1x16xf32>
    %29 = vector.shape_cast %26 : vector<1x16xf32> to vector<1x1x16xf32>
    tpu.vector_store %arg5[%c0_21, %c0_22, %c0_23], %29 {strides = array<i32>} : memref<1x1x16xf32, #tpu.memory_space<vmem>>, vector<1x1x16xf32>,
    return
  }
  func.func @transform_0(%arg0: i32) -> (i32, i32, i32) {
    %c0_i32 = arith.constant 0 : i32
    %c0_i32_0 = arith.constant 0 : i32
    %c0_i32_1 = arith.constant 0 : i32
    return %arg0, %c0_i32, %c0_i32_0 : i32, i32, i32
  }
  func.func @transform_1(%arg0: i32) -> (i32, i32) {
    %c0_i32 = arith.constant 0 : i32
    %c0_i32_0 = arith.constant 0 : i32
    %c0_i32_1 = arith.constant 0 : i32
    return %c0_i32, %c0_i32_0 : i32, i32
  }
  func.func @transform_2(%arg0: i32) -> (i32, i32) {
    %c0_i32 = arith.constant 0 : i32
    %c0_i32_0 = arith.constant 0 : i32
    %c0_i32_1 = arith.constant 0 : i32
    return %c0_i32, %c0_i32_0 : i32, i32
  }
  func.func @transform_3(%arg0: i32) -> (i32, i32, i32) {
    %c0_i32 = arith.constant 0 : i32
    %c0_i32_0 = arith.constant 0 : i32
    %c0_i32_1 = arith.constant 0 : i32
    return %arg0, %c0_i32, %c0_i32_0 : i32, i32, i32
  }
  func.func @transform_4(%arg0: i32) -> (i32, i32, i32) {
    %c0_i32 = arith.constant 0 : i32
    %c0_i32_0 = arith.constant 0 : i32
    %c0_i32_1 = arith.constant 0 : i32
    return %arg0, %c0_i32, %c0_i32_0 : i32, i32, i32
  }
}

</mosaic_0001>

<llo_original>
// kernel: tpu_custom_call.1
$region0: #{tpu_custom_call.1}
  #allocation0 [shape = 'u32[]', space=smem, size = 0x4, offset = 0x4, fixed_abs, tag = 'smem constant byte address 0x4 - core index']
  #allocation1 [shape = 'u32[144,128]{1,0:T(1,128)}', space=vmem, size = 0x12000, scoped, tag = 'internal scratch']
  %s0 = inlined_call_operand.vmem [shape: f32[2,64,16], index: 0, kind: input, shape index: {}]
  %s1 = inlined_call_operand.vmem [shape: f32[16,16], index: 1, kind: input, shape index: {}]
  %s2 = inlined_call_operand.vmem [shape: f32[16,16], index: 2, kind: input, shape index: {}]
  %s3 = inlined_call_operand.hbm [shape: f32[2,1,16], index: 3, kind: output, shape index: {0}]
  %s4 = inlined_call_operand.hbm [shape: f32[2,1,16], index: 4, kind: output, shape index: {1}]
  %5 = xla_tuple %s3, %s4
  %s6 = sld [smem:[#allocation0]]
  $region53: #{tpu_custom_call.1} parent=0
    _
  %s8 = ssub.s32 1, %s6
  %s9 = scalar_select 0, %s8, %s6
  $region1: #{tpu_custom_call.1} parent=0
    #allocation2 [shape = 'u8[1024]{0}', space=vmem, size = 0x400, scoped, tag = 'output window, operand 0']
    #allocation3 [shape = 's32[2]{0}', space=sflag, size = 0x8, scoped, tag = 'scoped memory for tpu_custom_call.1']
    #allocation4 [shape = 'u8[1024]{0}', space=vmem, size = 0x400, scoped, tag = 'output window, operand 1']
    #allocation5 [shape = 's32[2]{0}', space=sflag, size = 0x8, scoped, tag = 'scoped memory for tpu_custom_call.1']
    %10 = vsyncpa [#allocation3], 0
    %s11 = scalar_lea.sflag [#allocation3], 1
    %12 = vsyncpa %s11, 0
    %13 = vsyncpa [#allocation5], 0
    %s14 = scalar_lea.sflag [#allocation5], 1
    %15 = vsyncpa %s14, 0
    loop: start=0, step=1, limit=4
    $region2: #{tpu_custom_call.1} parent=1 // loop_pre_header
      _
    $region3: #{tpu_custom_call.1} parent=1 // loop_header
      %s17 = sphi 0, %s21
      %p18 = scmp.ge.s32.totalorder %s17, 4
      %s27 = sphi 0, %s29
      %s30 = sphi 0, %s27
      %s31 = sphi 0, %s30
      %s47 = sphi 0, %s31
      %s51 = sphi 0, %s51
      %s53 = sphi 0, %s51
      %s54 = sphi 0, %s53
      %s68 = sphi 0, %s54
      %s72 = sphi 0, %s72
      %s74 = sphi 0, %s72
      %s75 = sphi 0, %s74
      %s89 = sphi 0, %s75
      %s95 = sphi 0, %s97
      %s98 = sphi 0, %s95
      %s99 = sphi 0, %s98
      %s115 = sphi 0, %s99
      %s121 = sphi 0, %s123
      %s124 = sphi 0, %s121
      %s125 = sphi 0, %s124
      %s141 = sphi 0, %s125
    $region4: #{tpu_custom_call.1} parent=1 // loop_header_branch
      %20 = sbr.rel (%p18) target = $region8
    $region5: #{tpu_custom_call.1} parent=1 // loop_body
      %s22 = ssub.s32 %s17, 1
      %s23 = ssub.s32 %s17, 2
      %s24 = sadd.s32 %s17, 1
      %s25 = ssub.s32 %s17, %s24
      %p26 = scmp.eq.s32.totalorder %s25, 0
      %s28 = sadd.s32 %s27, 1
      %s29 = scalar_select %p26, %s27, %s28
      %p32 = pneg %p26
      %p33 = scmp.eq.s32.totalorder %s17, 1
      %p34 = por %p32, %p33
      %p35 = scmp.ne.s32.totalorder %s27, %s30
      %p36 = scmp.eq.s32.totalorder %s17, 0
      %p37 = por %p35, %p36
      %p38 = scmp.ne.s32.totalorder %s27, %s30
      %p39 = scmp.eq.s32.totalorder %s22, 1
      %p40 = por %p38, %p39
      %p41 = scmp.ne.s32.totalorder %s30, %s31
      %p42 = scmp.eq.s32.totalorder %s22, 0
      %p43 = por %p41, %p42
      %p44 = scmp.ne.s32.totalorder %s30, %s31
      %p45 = scmp.eq.s32.totalorder %s23, 1
      %p46 = por %p44, %p45
      %p48 = scmp.ne.s32.totalorder %s31, %s47
      %p49 = scmp.eq.s32.totalorder %s23, 0
      %p50 = por %p48, %p49
      %s52 = sadd.s32 %s51, 1
      %p55 = scmp.eq.s32.totalorder %s17, 1
      %p56 = scmp.ne.s32.totalorder %s51, %s53
      %p57 = scmp.eq.s32.totalorder %s17, 0
      %p58 = por %p56, %p57
      %p59 = scmp.ne.s32.totalorder %s51, %s53
      %p60 = scmp.eq.s32.totalorder %s22, 1
      %p61 = por %p59, %p60
      %p62 = scmp.ne.s32.totalorder %s53, %s54
      %p63 = scmp.eq.s32.totalorder %s22, 0
      %p64 = por %p62, %p63
      %p65 = scmp.ne.s32.totalorder %s53, %s54
      %p66 = scmp.eq.s32.totalorder %s23, 1
      %p67 = por %p65, %p66
      %p69 = scmp.ne.s32.totalorder %s54, %s68
      %p70 = scmp.eq.s32.totalorder %s23, 0
      %p71 = por %p69, %p70
      %s73 = sadd.s32 %s72, 1
      %p76 = scmp.eq.s32.totalorder %s17, 1
      %p77 = scmp.ne.s32.totalorder %s72, %s74
      %p78 = scmp.eq.s32.totalorder %s17, 0
      %p79 = por %p77, %p78
      %p80 = scmp.ne.s32.totalorder %s72, %s74
      %p81 = scmp.eq.s32.totalorder %s22, 1
      %p82 = por %p80, %p81
      %p83 = scmp.ne.s32.totalorder %s74, %s75
      %p84 = scmp.eq.s32.totalorder %s22, 0
      %p85 = por %p83, %p84
      %p86 = scmp.ne.s32.totalorder %s74, %s75
      %p87 = scmp.eq.s32.totalorder %s23, 1
      %p88 = por %p86, %p87
      %p90 = scmp.ne.s32.totalorder %s75, %s89
      %p91 = scmp.eq.s32.totalorder %s23, 0
      %p92 = por %p90, %p91
      %s93 = ssub.s32 %s17, %s24
      %p94 = scmp.eq.s32.totalorder %s93, 0
      %s96 = sadd.s32 %s95, 1
      %s97 = scalar_select %p94, %s95, %s96
      %p100 = pneg %p94
      %p101 = scmp.eq.s32.totalorder %s17, 1
      %p102 = por %p100, %p101
      %p103 = scmp.ne.s32.totalorder %s95, %s98
      %p104 = scmp.eq.s32.totalorder %s17, 0
      %p105 = por %p103, %p104
      %p106 = scmp.ne.s32.totalorder %s95, %s98
      %p107 = scmp.eq.s32.totalorder %s22, 1
      %p108 = por %p106, %p107
      %p109 = scmp.ne.s32.totalorder %s98, %s99
      %p110 = scmp.eq.s32.totalorder %s22, 0
      %p111 = por %p109, %p110
      %p112 = scmp.ne.s32.totalorder %s98, %s99
      %p113 = scmp.eq.s32.totalorder %s23, 1
      %p114 = por %p112, %p113
      %p116 = scmp.ne.s32.totalorder %s99, %s115
      %p117 = scmp.eq.s32.totalorder %s23, 0
      %p118 = por %p116, %p117
      %s119 = ssub.s32 %s17, %s24
      %p120 = scmp.eq.s32.totalorder %s119, 0
      %s122 = sadd.s32 %s121, 1
      %s123 = scalar_select %p120, %s121, %s122
      %p126 = pneg %p120
      %p127 = scmp.eq.s32.totalorder %s17, 1
      %p128 = por %p126, %p127
      %p129 = scmp.ne.s32.totalorder %s121, %s124
      %p130 = scmp.eq.s32.totalorder %s17, 0
      %p131 = por %p129, %p130
      %p132 = scmp.ne.s32.totalorder %s121, %s124
      %p133 = scmp.eq.s32.totalorder %s22, 1
      %p134 = por %p132, %p133
      %p135 = scmp.ne.s32.totalorder %s124, %s125
      %p136 = scmp.eq.s32.totalorder %s22, 0
      %p137 = por %p135, %p136
      %p138 = scmp.ne.s32.totalorder %s124, %s125
      %p139 = scmp.eq.s32.totalorder %s23, 1
      %p140 = por %p138, %p139
      %p142 = scmp.ne.s32.totalorder %s125, %s141
      %p143 = scmp.eq.s32.totalorder %s23, 0
      %p144 = por %p142, %p143
      %p145 = scmp.le.s32.totalorder 1, %s17
      %p146 = scmp.lt.s32.totalorder %s17, 3
      %p147 = pnand %p145, %p146
      %p148 = pneg %p147
      // Predicated region
      $region9: #{tpu_custom_call.1} parent=5 // pred_check
        _
      $region10: #{tpu_custom_call.1} parent=5 // pred_check_branch
        %150 = sbr.rel (%p147) target = $region12
      $region11: #{tpu_custom_call.1} parent=5 // pred_region
        %s151 = ssub.s32 %s17, 1
        // Predicated region
        $region13: #{tpu_custom_call.1} parent=11 // pred_check
          %p152 = pneg %p64
        $region14: #{tpu_custom_call.1} parent=11 // pred_check_branch
          %154 = sbr.rel (%p152) target = $region16
        $region15: #{tpu_custom_call.1} parent=11 // pred_region
          _
        $region16: #{tpu_custom_call.1} parent=11 // pred_fallthru
          _
        // Predicated region
        $region17: #{tpu_custom_call.1} parent=11 // pred_check
          %p155 = pneg %p85
        $region18: #{tpu_custom_call.1} parent=11 // pred_check_branch
          %157 = sbr.rel (%p155) target = $region20
        $region19: #{tpu_custom_call.1} parent=11 // pred_region
          _
        $region20: #{tpu_custom_call.1} parent=11 // pred_fallthru
          _
      $region12: #{tpu_custom_call.1} parent=5 // pred_fallthru
        _
      %p158 = scmp.lt.s32.totalorder %s17, 2
      // Predicated region
      $region21: #{tpu_custom_call.1} parent=5 // pred_check
        %p159 = pneg %p158
      $region22: #{tpu_custom_call.1} parent=5 // pred_check_branch
        %161 = sbr.rel (%p159) target = $region24
      $region23: #{tpu_custom_call.1} parent=5 // pred_region
        // Predicated region
        $region25: #{tpu_custom_call.1} parent=23 // pred_check
          %p162 = pneg %p37
        $region26: #{tpu_custom_call.1} parent=23 // pred_check_branch
          %164 = sbr.rel (%p162) target = $region28
        $region27: #{tpu_custom_call.1} parent=23 // pred_region
          %p165 = scmp.lt.s32.totalorder %s17, 1
          %s166 = scalar_select %p165, %s17, 1
          %s167 = smul.addr %s166, 8
          %s168 = smul.addr %s167, 8
          %s169 = scalar_lea.vmem %s0, %s168
        $region28: #{tpu_custom_call.1} parent=23 // pred_fallthru
          _
      $region24: #{tpu_custom_call.1} parent=5 // pred_fallthru
        _
      %p170 = scmp.le.s32.totalorder 1, %s17
      %p171 = scmp.lt.s32.totalorder %s17, 3
      %p172 = pnand %p170, %p171
      %p173 = pneg %p172
      // Predicated region
      $region29: #{tpu_custom_call.1} parent=5 // pred_check
        _
      $region30: #{tpu_custom_call.1} parent=5 // pred_check_branch
        %175 = sbr.rel (%p172) target = $region32
      $region31: #{tpu_custom_call.1} parent=5 // pred_region
        %s176 = ssub.s32 %s17, 1
        %p177 = scmp.lt.s32.totalorder %s22, 1
        %s178 = scalar_select %p177, %s22, 1
        %s179 = smul.addr %s178, 8
        %s180 = smul.addr %s179, 8
        %s181 = scalar_lea.vmem %s0, %s180
        %p182 = pneg %p43
        %p183 = pneg %p40
        %p184 = pneg %p64
        %p185 = pneg %p61
        %p186 = pneg %p85
        %p187 = pneg %p82
        %p188 = pneg %p111
        %p189 = pneg %p108
        %s190 = sand.u32 %s98, 1
        %s191 = scalar_lea.sflag [#allocation3], %s190
        %s192 = sand.u32 %s98, 1
        %s193 = scalar_lea.vmem [#allocation2], %s192
        %p194 = pneg %p137
        %p195 = pneg %p134
        %s196 = sand.u32 %s124, 1
        %s197 = scalar_lea.sflag [#allocation5], %s196
        %s198 = sand.u32 %s124, 1
        %s199 = scalar_lea.vmem [#allocation4], %s198
        %p200 = scmp.lt.s32.totalorder %s22, 1
        %s201 = scalar_select %p200, %s22, 1
        %s202 = smul.addr %s201, 8
        %s203 = smul.addr %s202, 8
        %s204 = scalar_lea.vmem %s0, %s203
        %v205 = vld [vmem:[%s204] sm:$0xff]
        %v206 = vld [vmem:[%s204 + $0x8] sm:$0xff]
        %v207 = vld [vmem:[%s204 + $0x10] sm:$0xff]
        %v208 = vld [vmem:[%s204 + $0x18] sm:$0xff]
        %v209 = vld [vmem:[%s204 + $0x20] sm:$0xff]
        %v210 = vld [vmem:[%s204 + $0x28] sm:$0xff]
        %v211 = vld [vmem:[%s204 + $0x30] sm:$0xff]
        %v212 = vld [vmem:[%s204 + $0x38] sm:$0xff]
        %vm213 = vcmask 130048
        %v214 = vsel %vm213, %v205, 0.0
        %v215 = vsel %vm213, %v206, 0.0
        %v216 = vadd.f32 %v214, %v215
        %v217 = vsel %vm213, %v207, 0.0
        %v218 = vadd.f32 %v216, %v217
        %v219 = vsel %vm213, %v208, 0.0
        %v220 = vadd.f32 %v218, %v219
        %v221 = vsel %vm213, %v209, 0.0
        %v222 = vadd.f32 %v220, %v221
        %v223 = vsel %vm213, %v210, 0.0
        %v224 = vadd.f32 %v222, %v223
        %v225 = vsel %vm213, %v211, 0.0
        %v226 = vadd.f32 %v224, %v225
        %v227 = vsel %vm213, %v212, 0.0
        %v228 = vadd.f32 %v226, %v227
        %v229 = vrot.slane %v228, 4
        %v230 = vadd.f32 %v228, %v229
        %v231 = vrot.slane %v230, 2
        %v232 = vadd.f32 %v230, %v231
        %v233 = vrot.slane %v232, 1
        %v234 = vadd.f32 %v232, %v233
        %v235 = vld [vmem:[%s1] sm:$0xff]
        %v236 = vld [vmem:[%s1 + $0x8] sm:$0xff]
        %v238 = vsel %vm213, %v234, 0
        %240 = vmatprep.subr.mxu0 0.0
        %241 = vmatpush1.msra.mxu0 0.0
        %242 = vmatprep.subr.mxu0 0.0
        %243 = vmatpush1.msra.mxu0 0.0
        %244 = vmatprep.subr.mxu0 0.0
        %245 = vmatpush1.msra.mxu0 0.0
        %246 = vmatprep.subr.mxu0 0.0
        %247 = vmatpush1.msra.mxu0 0.0
        %248 = vmatprep.subr.mxu0 0.0
        %249 = vmatpush1.msra.mxu0 0.0
        %250 = vmatprep.subr.mxu0 0.0
        %251 = vmatpush1.msra.mxu0 0.0
        %252 = vmatprep.subr.mxu0 0.0
        %253 = vmatpush1.msra.mxu0 0.0
        %254 = vmatprep.subr.mxu0 0.0
        %255 = vmatpush1.msra.mxu0 0.0
        %256 = vmatprep.subr.mxu0 0.0
        %257 = vmatpush1.msra.mxu0 0.0
        %258 = vmatprep.subr.mxu0 0.0
        %259 = vmatpush1.msra.mxu0 0.0
        %260 = vmatprep.subr.mxu0 0.0
        %261 = vmatpush1.msra.mxu0 0.0
        %262 = vmatprep.subr.mxu0 0.0
        %263 = vmatpush1.msra.mxu0 0.0
        %264 = vmatprep.subr.mxu0 0.0
        %265 = vmatpush1.msra.mxu0 0.0
        %266 = vmatprep.subr.mxu0 0.0
        %267 = vmatpush1.msra.mxu0 0.0
        %268 = vmatprep.subr.mxu0 0.0
        %269 = vmatpush1.msra.mxu0 %v236
        %270 = vmatprep.subr.mxu0 0.0
        %271 = vmatpush1.msra.mxu0 %v235
        %272 = vmatprep.subr.mxu0 0.0
        %273 = vmatpush2.msra.mxu0 0.0
        %274 = vmatprep.subr.mxu0 0.0
        %275 = vmatpush2.msra.mxu0 0.0
        %276 = vmatprep.subr.mxu0 0.0
        %277 = vmatpush2.msra.mxu0 0.0
        %278 = vmatprep.subr.mxu0 0.0
        %279 = vmatpush2.msra.mxu0 0.0
        %280 = vmatprep.subr.mxu0 0.0
        %281 = vmatpush2.msra.mxu0 0.0
        %282 = vmatprep.subr.mxu0 0.0
        %283 = vmatpush2.msra.mxu0 0.0
        %284 = vmatprep.subr.mxu0 0.0
        %285 = vmatpush2.msra.mxu0 0.0
        %286 = vmatprep.subr.mxu0 0.0
        %287 = vmatpush2.msra.mxu0 0.0
        %288 = vmatprep.subr.mxu0 0.0
        %289 = vmatpush2.msra.mxu0 0.0
        %290 = vmatprep.subr.mxu0 0.0
        %291 = vmatpush2.msra.mxu0 0.0
        %292 = vmatprep.subr.mxu0 0.0
        %293 = vmatpush2.msra.mxu0 0.0
        %294 = vmatprep.subr.mxu0 0.0
        %295 = vmatpush2.msra.mxu0 0.0
        %296 = vmatprep.subr.mxu0 0.0
        %297 = vmatpush2.msra.mxu0 0.0
        %298 = vmatprep.subr.mxu0 0.0
        %299 = vmatpush2.msra.mxu0 0.0
        %300 = vmatprep.subr.mxu0 0.0
        %301 = vmatpush2.msra.mxu0 0.0
        %302 = vmatprep.subr.mxu0 0.0
        %303 = vmatpush2.msra.mxu0 0.0
        %304 = vmatprep.mubr.f32.mxu0 0.0
        %305 = vmatmul.mubr.f32.gmra.mxu0 %v238
        %v306 = vpop.f32.mrf.mxu0
        %v307 = vadd.f32 0.0, %v306
        %v308 = vpop.f32.mrf.mxu0
        %309 = vdwg.mxu0
        %v310 = vmul.f32 %v307, 0.015625
        %v311 = vld [vmem:[%s2] sm:$0xff]
        %v312 = vld [vmem:[%s2 + $0x8] sm:$0xff]
        %v314 = vsel %vm213, %v310, 0
        %316 = vmatprep.subr.mxu0 0.0
        %317 = vmatpush1.msra.mxu0 0.0
        %318 = vmatprep.subr.mxu0 0.0
        %319 = vmatpush1.msra.mxu0 0.0
        %320 = vmatprep.subr.mxu0 0.0
        %321 = vmatpush1.msra.mxu0 0.0
        %322 = vmatprep.subr.mxu0 0.0
        %323 = vmatpush1.msra.mxu0 0.0
        %324 = vmatprep.subr.mxu0 0.0
        %325 = vmatpush1.msra.mxu0 0.0
        %326 = vmatprep.subr.mxu0 0.0
        %327 = vmatpush1.msra.mxu0 0.0
        %328 = vmatprep.subr.mxu0 0.0
        %329 = vmatpush1.msra.mxu0 0.0
        %330 = vmatprep.subr.mxu0 0.0
        %331 = vmatpush1.msra.mxu0 0.0
        %332 = vmatprep.subr.mxu0 0.0
        %333 = vmatpush1.msra.mxu0 0.0
        %334 = vmatprep.subr.mxu0 0.0
        %335 = vmatpush1.msra.mxu0 0.0
        %336 = vmatprep.subr.mxu0 0.0
        %337 = vmatpush1.msra.mxu0 0.0
        %338 = vmatprep.subr.mxu0 0.0
        %339 = vmatpush1.msra.mxu0 0.0
        %340 = vmatprep.subr.mxu0 0.0
        %341 = vmatpush1.msra.mxu0 0.0
        %342 = vmatprep.subr.mxu0 0.0
        %343 = vmatpush1.msra.mxu0 0.0
        %344 = vmatprep.subr.mxu0 0.0
        %345 = vmatpush1.msra.mxu0 %v312
        %346 = vmatprep.subr.mxu0 0.0
        %347 = vmatpush1.msra.mxu0 %v311
        %348 = vmatprep.subr.mxu0 0.0
        %349 = vmatpush2.msra.mxu0 0.0
        %350 = vmatprep.subr.mxu0 0.0
        %351 = vmatpush2.msra.mxu0 0.0
        %352 = vmatprep.subr.mxu0 0.0
        %353 = vmatpush2.msra.mxu0 0.0
        %354 = vmatprep.subr.mxu0 0.0
        %355 = vmatpush2.msra.mxu0 0.0
        %356 = vmatprep.subr.mxu0 0.0
        %357 = vmatpush2.msra.mxu0 0.0
        %358 = vmatprep.subr.mxu0 0.0
        %359 = vmatpush2.msra.mxu0 0.0
        %360 = vmatprep.subr.mxu0 0.0
        %361 = vmatpush2.msra.mxu0 0.0
        %362 = vmatprep.subr.mxu0 0.0
        %363 = vmatpush2.msra.mxu0 0.0
        %364 = vmatprep.subr.mxu0 0.0
        %365 = vmatpush2.msra.mxu0 0.0
        %366 = vmatprep.subr.mxu0 0.0
        %367 = vmatpush2.msra.mxu0 0.0
        %368 = vmatprep.subr.mxu0 0.0
        %369 = vmatpush2.msra.mxu0 0.0
        %370 = vmatprep.subr.mxu0 0.0
        %371 = vmatpush2.msra.mxu0 0.0
        %372 = vmatprep.subr.mxu0 0.0
        %373 = vmatpush2.msra.mxu0 0.0
        %374 = vmatprep.subr.mxu0 0.0
        %375 = vmatpush2.msra.mxu0 0.0
        %376 = vmatprep.subr.mxu0 0.0
        %377 = vmatpush2.msra.mxu0 0.0
        %378 = vmatprep.subr.mxu0 0.0
        %379 = vmatpush2.msra.mxu0 0.0
        %380 = vmatprep.mubr.f32.mxu0 0.0
        %381 = vmatmul.mubr.f32.gmra.mxu0 %v314
        %v382 = vpop.f32.mrf.mxu0
        %v383 = vadd.f32 0.0, %v382
        %v384 = vpop.f32.mrf.mxu0
        %385 = vdwg.mxu0
        %v386 = vlaneseq
        %v387 = vshrl.u32 %v386, 7
        %v388 = vsub.s32 0, %v387
        %v389 = vrot.slane %v383, %v388
        %v390 = vsub.f32 %v205, %v389
        %v391 = vsub.f32 %v206, %v389
        %v392 = vsub.f32 %v207, %v389
        %v393 = vsub.f32 %v208, %v389
        %v394 = vsub.f32 %v209, %v389
        %v395 = vsub.f32 %v210, %v389
        %v396 = vsub.f32 %v211, %v389
        %v397 = vsub.f32 %v212, %v389
        %v398 = vmul.f32 %v390, %v390
        %v399 = vmul.f32 %v391, %v391
        %v400 = vmul.f32 %v392, %v392
        %v401 = vmul.f32 %v393, %v393
        %v402 = vmul.f32 %v394, %v394
        %v403 = vmul.f32 %v395, %v395
        %v404 = vmul.f32 %v396, %v396
        %v405 = vmul.f32 %v397, %v397
        %v406 = vsel %vm213, %v398, 0.0
        %v407 = vsel %vm213, %v399, 0.0
        %v408 = vadd.f32 %v406, %v407
        %v409 = vsel %vm213, %v400, 0.0
        %v410 = vadd.f32 %v408, %v409
        %v411 = vsel %vm213, %v401, 0.0
        %v412 = vadd.f32 %v410, %v411
        %v413 = vsel %vm213, %v402, 0.0
        %v414 = vadd.f32 %v412, %v413
        %v415 = vsel %vm213, %v403, 0.0
        %v416 = vadd.f32 %v414, %v415
        %v417 = vsel %vm213, %v404, 0.0
        %v418 = vadd.f32 %v416, %v417
        %v419 = vsel %vm213, %v405, 0.0
        %v420 = vadd.f32 %v418, %v419
        %v421 = vrot.slane %v420, 4
        %v422 = vadd.f32 %v420, %v421
        %v423 = vrot.slane %v422, 2
        %v424 = vadd.f32 %v422, %v423
        %v425 = vrot.slane %v424, 1
        %v426 = vadd.f32 %v424, %v425
        %v428 = vsel %vm213, %v426, 0
        %430 = vmatprep.subr.mxu0 0.0
        %431 = vmatpush1.msra.mxu0 0.0
        %432 = vmatprep.subr.mxu0 0.0
        %433 = vmatpush1.msra.mxu0 0.0
        %434 = vmatprep.subr.mxu0 0.0
        %435 = vmatpush1.msra.mxu0 0.0
        %436 = vmatprep.subr.mxu0 0.0
        %437 = vmatpush1.msra.mxu0 0.0
        %438 = vmatprep.subr.mxu0 0.0
        %439 = vmatpush1.msra.mxu0 0.0
        %440 = vmatprep.subr.mxu0 0.0
        %441 = vmatpush1.msra.mxu0 0.0
        %442 = vmatprep.subr.mxu0 0.0
        %443 = vmatpush1.msra.mxu0 0.0
        %444 = vmatprep.subr.mxu0 0.0
        %445 = vmatpush1.msra.mxu0 0.0
        %446 = vmatprep.subr.mxu0 0.0
        %447 = vmatpush1.msra.mxu0 0.0
        %448 = vmatprep.subr.mxu0 0.0
        %449 = vmatpush1.msra.mxu0 0.0
        %450 = vmatprep.subr.mxu0 0.0
        %451 = vmatpush1.msra.mxu0 0.0
        %452 = vmatprep.subr.mxu0 0.0
        %453 = vmatpush1.msra.mxu0 0.0
        %454 = vmatprep.subr.mxu0 0.0
        %455 = vmatpush1.msra.mxu0 0.0
        %456 = vmatprep.subr.mxu0 0.0
        %457 = vmatpush1.msra.mxu0 0.0
        %458 = vmatprep.subr.mxu0 0.0
        %459 = vmatpush1.msra.mxu0 %v236
        %460 = vmatprep.subr.mxu0 0.0
        %461 = vmatpush1.msra.mxu0 %v235
        %462 = vmatprep.subr.mxu0 0.0
        %463 = vmatpush2.msra.mxu0 0.0
        %464 = vmatprep.subr.mxu0 0.0
        %465 = vmatpush2.msra.mxu0 0.0
        %466 = vmatprep.subr.mxu0 0.0
        %467 = vmatpush2.msra.mxu0 0.0
        %468 = vmatprep.subr.mxu0 0.0
        %469 = vmatpush2.msra.mxu0 0.0
        %470 = vmatprep.subr.mxu0 0.0
        %471 = vmatpush2.msra.mxu0 0.0
        %472 = vmatprep.subr.mxu0 0.0
        %473 = vmatpush2.msra.mxu0 0.0
        %474 = vmatprep.subr.mxu0 0.0
        %475 = vmatpush2.msra.mxu0 0.0
        %476 = vmatprep.subr.mxu0 0.0
        %477 = vmatpush2.msra.mxu0 0.0
        %478 = vmatprep.subr.mxu0 0.0
        %479 = vmatpush2.msra.mxu0 0.0
        %480 = vmatprep.subr.mxu0 0.0
        %481 = vmatpush2.msra.mxu0 0.0
        %482 = vmatprep.subr.mxu0 0.0
        %483 = vmatpush2.msra.mxu0 0.0
        %484 = vmatprep.subr.mxu0 0.0
        %485 = vmatpush2.msra.mxu0 0.0
        %486 = vmatprep.subr.mxu0 0.0
        %487 = vmatpush2.msra.mxu0 0.0
        %488 = vmatprep.subr.mxu0 0.0
        %489 = vmatpush2.msra.mxu0 0.0
        %490 = vmatprep.subr.mxu0 0.0
        %491 = vmatpush2.msra.mxu0 0.0
        %492 = vmatprep.subr.mxu0 0.0
        %493 = vmatpush2.msra.mxu0 0.0
        %494 = vmatprep.mubr.f32.mxu0 0.0
        %495 = vmatmul.mubr.f32.gmra.mxu0 %v428
        %v496 = vpop.f32.mrf.mxu0
        %v497 = vadd.f32 0.0, %v496
        %v498 = vpop.f32.mrf.mxu0
        %499 = vdwg.mxu0
        %v500 = vmul.f32 %v497, 0.015625
        %vm501 = vcmask 122880
        %502 = vst.msk [vmem:[%s193] sm:$0x1] %vm501, %v383
        %v504 = vsel %vm213, %v500, 0
        %506 = vmatprep.subr.mxu0 0.0
        %507 = vmatpush1.msra.mxu0 0.0
        %508 = vmatprep.subr.mxu0 0.0
        %509 = vmatpush1.msra.mxu0 0.0
        %510 = vmatprep.subr.mxu0 0.0
        %511 = vmatpush1.msra.mxu0 0.0
        %512 = vmatprep.subr.mxu0 0.0
        %513 = vmatpush1.msra.mxu0 0.0
        %514 = vmatprep.subr.mxu0 0.0
        %515 = vmatpush1.msra.mxu0 0.0
        %516 = vmatprep.subr.mxu0 0.0
        %517 = vmatpush1.msra.mxu0 0.0
        %518 = vmatprep.subr.mxu0 0.0
        %519 = vmatpush1.msra.mxu0 0.0
        %520 = vmatprep.subr.mxu0 0.0
        %521 = vmatpush1.msra.mxu0 0.0
        %522 = vmatprep.subr.mxu0 0.0
        %523 = vmatpush1.msra.mxu0 0.0
        %524 = vmatprep.subr.mxu0 0.0
        %525 = vmatpush1.msra.mxu0 0.0
        %526 = vmatprep.subr.mxu0 0.0
        %527 = vmatpush1.msra.mxu0 0.0
        %528 = vmatprep.subr.mxu0 0.0
        %529 = vmatpush1.msra.mxu0 0.0
        %530 = vmatprep.subr.mxu0 0.0
        %531 = vmatpush1.msra.mxu0 0.0
        %532 = vmatprep.subr.mxu0 0.0
        %533 = vmatpush1.msra.mxu0 0.0
        %534 = vmatprep.subr.mxu0 0.0
        %535 = vmatpush1.msra.mxu0 %v312
        %536 = vmatprep.subr.mxu0 0.0
        %537 = vmatpush1.msra.mxu0 %v311
        %538 = vmatprep.subr.mxu0 0.0
        %539 = vmatpush2.msra.mxu0 0.0
        %540 = vmatprep.subr.mxu0 0.0
        %541 = vmatpush2.msra.mxu0 0.0
        %542 = vmatprep.subr.mxu0 0.0
        %543 = vmatpush2.msra.mxu0 0.0
        %544 = vmatprep.subr.mxu0 0.0
        %545 = vmatpush2.msra.mxu0 0.0
        %546 = vmatprep.subr.mxu0 0.0
        %547 = vmatpush2.msra.mxu0 0.0
        %548 = vmatprep.subr.mxu0 0.0
        %549 = vmatpush2.msra.mxu0 0.0
        %550 = vmatprep.subr.mxu0 0.0
        %551 = vmatpush2.msra.mxu0 0.0
        %552 = vmatprep.subr.mxu0 0.0
        %553 = vmatpush2.msra.mxu0 0.0
        %554 = vmatprep.subr.mxu0 0.0
        %555 = vmatpush2.msra.mxu0 0.0
        %556 = vmatprep.subr.mxu0 0.0
        %557 = vmatpush2.msra.mxu0 0.0
        %558 = vmatprep.subr.mxu0 0.0
        %559 = vmatpush2.msra.mxu0 0.0
        %560 = vmatprep.subr.mxu0 0.0
        %561 = vmatpush2.msra.mxu0 0.0
        %562 = vmatprep.subr.mxu0 0.0
        %563 = vmatpush2.msra.mxu0 0.0
        %564 = vmatprep.subr.mxu0 0.0
        %565 = vmatpush2.msra.mxu0 0.0
        %566 = vmatprep.subr.mxu0 0.0
        %567 = vmatpush2.msra.mxu0 0.0
        %568 = vmatprep.subr.mxu0 0.0
        %569 = vmatpush2.msra.mxu0 0.0
        %570 = vmatprep.mubr.f32.mxu0 0.0
        %571 = vmatmul.mubr.f32.gmra.mxu0 %v504
        %v572 = vpop.f32.mrf.mxu0
        %v573 = vadd.f32 1e-05, %v572
        %v574 = vpop.f32.mrf.mxu0
        %575 = vdwg.mxu0
        %v576 = vrsqrt.pop %v573
        %577 = vst.msk [vmem:[%s199] sm:$0x1] %vm501, %v576
        %s578 = sand.u32 %s98, 1
        %s579 = scalar_lea.sflag [#allocation3], %s578
        %s580 = sand.u32 %s98, 1
        %s581 = scalar_lea.vmem [#allocation2], %s580
        %s582 = sand.u32 %s124, 1
        %s583 = scalar_lea.sflag [#allocation5], %s582
        %s584 = sand.u32 %s124, 1
        %s585 = scalar_lea.vmem [#allocation4], %s584
        // Predicated region
        $region33: #{tpu_custom_call.1} parent=31 // pred_check
          %p586 = pneg %p108
        $region34: #{tpu_custom_call.1} parent=31 // pred_check_branch
          %588 = sbr.rel (%p586) target = $region36
        $region35: #{tpu_custom_call.1} parent=31 // pred_region
          %s590 = ssub.s32 16, 16
          %591 = vsyncadd %s579, %s590
          %s592 = smul.addr %s22, 16
          %s593 = scalar_lea.hbm %s3, %s592
          %s595 = sshll.u32 %s581, 4
          %s596 = int_to_ptr.vmem [resolvable:$true] %s595
          %598 = dma.vmem_to_hbm [thread:$0]  %s596, 16, %s593, %s579
        $region36: #{tpu_custom_call.1} parent=31 // pred_fallthru
          _
        // Predicated region
        $region37: #{tpu_custom_call.1} parent=31 // pred_check
          %p599 = pneg %p134
        $region38: #{tpu_custom_call.1} parent=31 // pred_check_branch
          %601 = sbr.rel (%p599) target = $region40
        $region39: #{tpu_custom_call.1} parent=31 // pred_region
          %s603 = ssub.s32 16, 16
          %604 = vsyncadd %s583, %s603
          %s605 = smul.addr %s22, 16
          %s606 = scalar_lea.hbm %s4, %s605
          %s608 = sshll.u32 %s585, 4
          %s609 = int_to_ptr.vmem [resolvable:$true] %s608
          %611 = dma.vmem_to_hbm [thread:$0]  %s609, 16, %s606, %s583
        $region40: #{tpu_custom_call.1} parent=31 // pred_fallthru
          _
      $region32: #{tpu_custom_call.1} parent=5 // pred_fallthru
        _
      %p612 = scmp.le.s32.totalorder 2, %s17
      // Predicated region
      $region41: #{tpu_custom_call.1} parent=5 // pred_check
        %p613 = pneg %p612
      $region42: #{tpu_custom_call.1} parent=5 // pred_check_branch
        %615 = sbr.rel (%p613) target = $region44
      $region43: #{tpu_custom_call.1} parent=5 // pred_region
        %s616 = ssub.s32 %s17, 2
        // Predicated region
        $region45: #{tpu_custom_call.1} parent=43 // pred_check
          %p617 = pneg %p114
        $region46: #{tpu_custom_call.1} parent=43 // pred_check_branch
          %619 = sbr.rel (%p617) target = $region48
        $region47: #{tpu_custom_call.1} parent=43 // pred_region
          %s620 = sand.u32 %s99, 1
          %s621 = scalar_lea.sflag [#allocation3], %s620
          %s622 = sand.u32 %s99, 1
          %s623 = scalar_lea.vmem [#allocation2], %s622
          %624 = dma.done %s621, 16
        $region48: #{tpu_custom_call.1} parent=43 // pred_fallthru
          _
        // Predicated region
        $region49: #{tpu_custom_call.1} parent=43 // pred_check
          %p625 = pneg %p140
        $region50: #{tpu_custom_call.1} parent=43 // pred_check_branch
          %627 = sbr.rel (%p625) target = $region52
        $region51: #{tpu_custom_call.1} parent=43 // pred_region
          %s628 = sand.u32 %s125, 1
          %s629 = scalar_lea.sflag [#allocation5], %s628
          %s630 = sand.u32 %s125, 1
          %s631 = scalar_lea.vmem [#allocation4], %s630
          %632 = dma.done %s629, 16
        $region52: #{tpu_custom_call.1} parent=43 // pred_fallthru
          _
      $region44: #{tpu_custom_call.1} parent=5 // pred_fallthru
        _
    $region6: #{tpu_custom_call.1} parent=1 // loop_footer
      %s21 = sadd.s32 1, %s17
    $region7: #{tpu_custom_call.1} parent=1 // loop_footer_branch
      %16 = sbr.rel target = $region3
    $region8: #{tpu_custom_call.1} parent=1 // loop_exit
      _
    %633 = vsyncpa [#allocation3], 1
    %s634 = scalar_lea.sflag [#allocation3], 1
    %635 = vsyncpa %s634, 1
    %636 = vsyncpa [#allocation5], 1
    %s637 = scalar_lea.sflag [#allocation5], 1
    %638 = vsyncpa %s637, 1

</llo_original>
